<compile_context>
chip_gen: v5e
topology: v5e:2x2
jax: 0.10.0
libtpu: 0.0.40
codegen_flags: <defaults>
</compile_context>

<pallas_src>
import jax
import jax.numpy as jnp
from jax.experimental import pallas as pl
from jax.experimental.pallas import tpu as pltpu


def _laplacian_kernel(a_ref, x_ref, o_ref):
    # a_ref: (1,) f32 scalar (-1/a) in SMEM; x_ref/o_ref: (block_rows, 128) VMEM tiles
    neg_inv_a = a_ref[0]
    x = x_ref[...].astype(jnp.float32)          # no-op for f32, upcast for bf16
    o_ref[...] = jnp.exp(jnp.abs(x) * neg_inv_a).astype(o_ref.dtype)


def laplacian_activation(x, a, *, tile_rows=8192, vmem_limit_bytes=40 * 1024 * 1024):
    """x: any-shape float array. a: shape-(1,) parameter (assumed > 0, as in the
    PyTorch module). Returns exp(-|x| / a) with x's shape and dtype."""
    orig_shape = x.shape
    orig_dtype = x.dtype
    LANES = 128

    # Scalar precompute (free XLA scalar op). Keep full precision in f32 even for
    # bf16 inputs; the kernel casts only on the final store.
    neg_inv_a = (-1.0 / a.astype(jnp.float32)).reshape(1)

    flat = x.reshape(-1)
    n = flat.shape[0]
    rows = pl.cdiv(n, LANES)
    n_lane_padded = rows * LANES
    needs_pad = n_lane_padded != n
    if needs_pad:
        # Only pad to a multiple of 128 (required for the (rows, 128) reshape);
        # skipped entirely in the common 128-aligned case.
        flat = jnp.pad(flat, (0, n_lane_padded - n))
    x2d = flat.reshape(rows, LANES)

    # Clamp the block height to the (sublane-rounded) array extent so small inputs
    # get a single block. Multiple of 16 satisfies both f32 (8,128) and bf16
    # (16,128) tiling.
    block_rows = min(tile_rows, pl.cdiv(rows, 16) * 16)
    grid = (pl.cdiv(rows, block_rows),)  # ragged last block is masked by Pallas

    out2d = pl.pallas_call(
        _laplacian_kernel,
        out_shape=jax.ShapeDtypeStruct((rows, LANES), orig_dtype),
        grid_spec=pltpu.PrefetchScalarGridSpec(
            num_scalar_prefetch=0,
            grid=grid,
            in_specs=[
                pl.BlockSpec(memory_space=pltpu.SMEM),                  # -1/a (f32)
                pl.BlockSpec((block_rows, LANES), lambda i: (i, 0)),    # x tile
            ],
            out_specs=pl.BlockSpec((block_rows, LANES), lambda i: (i, 0)),
        ),
        compiler_params=pltpu.CompilerParams(
            # "parallel" shards the grid across v7x's 2 TensorCores; no-op on v5e/v6e.
            dimension_semantics=("parallel",),
            vmem_limit_bytes=vmem_limit_bytes,
        ),
    )(neg_inv_a, x2d)

    out_flat = out2d.reshape(-1)
    if needs_pad:
        out_flat = out_flat[:n]
    return out_flat.reshape(orig_shape)


if __name__ == "__main__":
    key = jax.random.PRNGKey(0)
    # NCHW input consistent with how LaplacianActivation is used in PAPR
    x = jax.random.normal(key, (2, 4, 16, 16), dtype=jnp.float32)

    # Deterministic parameter init: a = 1.0 * ones(1)  (module __init__ default)
    a = jnp.ones((1,), dtype=jnp.float32)

    y = laplacian_activation(x, a)
    y = jax.block_until_ready(y)

    # reference check (plain JAX)
    y_ref = jnp.exp(-jnp.abs(x) / a[0])
    assert y.shape == x.shape and y.dtype == x.dtype
    assert jnp.allclose(y, y_ref, atol=1e-6, rtol=1e-6)
    print("KERNEL_OK")
</pallas_src>

<mosaic_0001>
module attributes {stable_mosaic.version = 11 : i64} {
  func.func @_laplacian_kernel(%arg0: i32, %arg1: memref<1xf32, #tpu.memory_space<smem>>, %arg2: memref<16x128xf32, #tpu.memory_space<vmem>>, %arg3: memref<16x128xf32, #tpu.memory_space<vmem>>) attributes {dimension_semantics = [#tpu.dimension_semantics<parallel>], iteration_bounds = array<i64: 1>, scalar_prefetch = 0 : i64, scratch_operands = 0 : i64, tpu.core_type = #tpu.core_type<tc>, window_params = [{transform_indices = @transform_0, window_bounds = array<i64: 1>}, {transform_indices = @transform_1, window_bounds = array<i64: 16, 128>}, {transform_indices = @transform_2, window_bounds = array<i64: 16, 128>}]} {
    %c0 = arith.constant 0 : index
    %0 = memref.load %arg1[%c0] : memref<1xf32, #tpu.memory_space<smem>>
    %c0_0 = arith.constant 0 : index
    %c0_1 = arith.constant 0 : index
    %1 = vector.load %arg2[%c0_0, %c0_1] : memref<16x128xf32, #tpu.memory_space<vmem>>, vector<16x128xf32>
    %2 = math.absf %1 : vector<16x128xf32>
    %3 = vector.broadcast %0 : f32 to vector<16x128xf32>
    %4 = arith.mulf %2, %3 : vector<16x128xf32>
    %5 = math.exp %4 : vector<16x128xf32>
    %c0_2 = arith.constant 0 : index
    %c0_3 = arith.constant 0 : index
    %6 = vector.load %arg3[%c0_2, %c0_3] : memref<16x128xf32, #tpu.memory_space<vmem>>, vector<16x128xf32>
    tpu.vector_store %arg3[%c0_2, %c0_3], %5 {strides = array<i32>} : memref<16x128xf32, #tpu.memory_space<vmem>>, vector<16x128xf32>,
    return
  }
  func.func @transform_0(%arg0: i32) -> i32 {
    %c0_i32 = arith.constant 0 : i32
    %c0_i32_0 = arith.constant 0 : i32
    return %c0_i32 : i32
  }
  func.func @transform_1(%arg0: i32) -> (i32, i32) {
    %c0_i32 = arith.constant 0 : i32
    %c0_i32_0 = arith.constant 0 : i32
    return %arg0, %c0_i32 : i32, i32
  }
  func.func @transform_2(%arg0: i32) -> (i32, i32) {
    %c0_i32 = arith.constant 0 : i32
    %c0_i32_0 = arith.constant 0 : i32
    return %arg0, %c0_i32 : i32, i32
  }
}

</mosaic_0001>

<llo_original>
// kernel: tpu_custom_call.1
$region0: #{tpu_custom_call.1}
  #allocation0 [shape = 'u32[]', space=smem, size = 0x4, offset = 0x4, fixed_abs, tag = 'smem constant byte address 0x4 - core index']
  #allocation1 [shape = 'u32[72,128]{1,0:T(1,128)}', space=vmem, size = 0x9000, scoped, tag = 'internal scratch']
  #allocation2 [shape = 'f32[1]{0:T(128)S(6)}', space=smem, size = 0x200, scoped, tag = 'scoped memory for tpu_custom_call.1']
  %s0 = inlined_call_operand.<no memory space> [shape: f32[1], index: 0, kind: input, shape index: {}]
  %s1 = inlined_call_operand.hbm [shape: f32[16,128], index: 1, kind: input, shape index: {}]
  %s2 = inlined_call_operand.hbm [shape: f32[16,128], index: 2, kind: output, shape index: {}]
  %s3 = sld [smem:[#allocation0]]
  $region22: #{tpu_custom_call.1} parent=0
    _
  %s5 = ssub.s32 1, %s3
  %s6 = scalar_select 0, %s5, %s3
  %7 = sst [smem:[#allocation2]] %s0
  $region1: #{tpu_custom_call.1} parent=0
    #allocation3 [shape = 'u8[8192]{0}', space=vmem, size = 0x2000, scoped, tag = 'input window, operand 1, single buffered']
    #allocation4 [shape = 's32[1]{0}', space=sflag, size = 0x4, scoped, tag = 'scoped memory for tpu_custom_call.1']
    #allocation5 [shape = 's32[1]{0}', space=sflag, size = 0x4, scoped, tag = 'scoped memory for tpu_custom_call.1']
    #allocation6 [shape = 'u8[8192]{0}', space=vmem, size = 0x2000, scoped, tag = 'output window, operand 0, single buffered']
    %8 = vsyncpa [#allocation4], 0
    %9 = vsyncpa [#allocation5], 0
    // Predicated region
    $region2: #{tpu_custom_call.1} parent=1 // pred_check
      _
    $region3: #{tpu_custom_call.1} parent=1 // pred_check_branch
      %11 = sbr.rel (0) target = $region5
    $region4: #{tpu_custom_call.1} parent=1 // pred_region
      _
    $region5: #{tpu_custom_call.1} parent=1 // pred_fallthru
      _
    // Predicated region
    $region6: #{tpu_custom_call.1} parent=1 // pred_check
      _
    $region7: #{tpu_custom_call.1} parent=1 // pred_check_branch
      %13 = sbr.rel (0) target = $region9
    $region8: #{tpu_custom_call.1} parent=1 // pred_region
      %15 = vsyncadd [#allocation4], 0
      %s16 = sshll.u32 %s1, 4
      %s17 = int_to_ptr.hbm [resolvable:$true] %s16
      %s18 = sshll.u32 [#allocation3], 4
      %s19 = int_to_ptr.vmem [resolvable:$true] %s18
      %24 = dma.hbm_to_vmem [thread:$0]  %s17, 256, %s19, [#allocation4], 128, 128, 8
    $region9: #{tpu_custom_call.1} parent=1 // pred_fallthru
      _
    // Predicated region
    $region10: #{tpu_custom_call.1} parent=1 // pred_check
      _
    $region11: #{tpu_custom_call.1} parent=1 // pred_check_branch
      %26 = sbr.rel (0) target = $region13
    $region12: #{tpu_custom_call.1} parent=1 // pred_region
      %28 = dma.done [#allocation4], 256
    $region13: #{tpu_custom_call.1} parent=1 // pred_fallthru
      _
    %s29 = sld [smem:[#allocation2]]
    %v30 = vld [vmem:[#allocation3] sm:$0xff]
    %v31 = vld [vmem:[#allocation3 + $0x8] sm:$0xff]
    %v32 = vand.u32 2147483647, %v30
    %v33 = vand.u32 2147483647, %v31
    %v34 = vstv %s29
    %v35 = vmul.f32 %v32, %v34
    %v36 = vmul.f32 %v33, %v34
    %v37 = vmul.f32 %v35, 1.442695
    %v38 = vpow.pop %v37
    %v39 = vmul.f32 %v36, 1.442695
    %v40 = vpow.pop %v39
    %41 = vst [vmem:[#allocation6] sm:$0xff] %v38
    %42 = vst [vmem:[#allocation6 + $0x8] sm:$0xff] %v40
    // Predicated region
    $region14: #{tpu_custom_call.1} parent=1 // pred_check
      _
    $region15: #{tpu_custom_call.1} parent=1 // pred_check_branch
      %44 = sbr.rel (0) target = $region17
    $region16: #{tpu_custom_call.1} parent=1 // pred_region
      %46 = vsyncadd [#allocation5], 0
      %s47 = sshll.u32 [#allocation6], 4
      %s48 = int_to_ptr.vmem [resolvable:$true] %s47
      %s49 = sshll.u32 %s2, 4
      %s50 = int_to_ptr.hbm [resolvable:$true] %s49
      %55 = dma.vmem_to_hbm [thread:$0]  %s48, 256, %s50, [#allocation5], 128, 128, 8
    $region17: #{tpu_custom_call.1} parent=1 // pred_fallthru
      _
    // Predicated region
    $region18: #{tpu_custom_call.1} parent=1 // pred_check
      _
    $region19: #{tpu_custom_call.1} parent=1 // pred_check_branch
      %57 = sbr.rel (0) target = $region21
    $region20: #{tpu_custom_call.1} parent=1 // pred_region
      %59 = dma.done [#allocation5], 256
    $region21: #{tpu_custom_call.1} parent=1 // pred_fallthru
      _
    %60 = vsyncpa [#allocation4], 1
    %61 = vsyncpa [#allocation5], 1

</llo_original>
